<compile_context>
chip_gen: v5e
topology: v5e:2x2
jax: 0.10.0
libtpu: 0.0.40
codegen_flags: <defaults>
</compile_context>

<pallas_src>
import jax
import jax.numpy as jnp
from jax.experimental import pallas as pl
from jax.experimental.pallas import tpu as pltpu

_LANES = 128


def _round_up(x, m):
    return ((x + m - 1) // m) * m


def _smooth_l1_partial_sum_kernel(x_ref, y_ref, out_ref):
    # Per-tile partial sum of the smooth-L1 loss -> SMEM scalar for this tile.
    d = (x_ref[...] - y_ref[...]).astype(jnp.float32)
    ad = jnp.abs(d)
    loss = jnp.where(ad < 1.0, 0.5 * d * d, ad - 0.5)
    out_ref[0, 0] = jnp.sum(loss)


def _smooth_l1_elementwise_kernel(x_ref, y_ref, out_ref):
    d = (x_ref[...] - y_ref[...]).astype(jnp.float32)
    ad = jnp.abs(d)
    loss = jnp.where(ad < 1.0, 0.5 * d * d, ad - 0.5)
    out_ref[...] = loss.astype(out_ref.dtype)


def _prepare_lane_dense(x, y, tile_rows):
    """Flatten + zero-pad both operands to a (padded_rows, 128) layout."""
    n = x.size
    rows = pl.cdiv(n, _LANES)
    tile_r = min(int(tile_rows), _round_up(rows, 8))
    tile_r = max(8, _round_up(tile_r, 8))
    padded_rows = _round_up(rows, tile_r)
    padded_n = padded_rows * _LANES

    xf = jnp.ravel(x)
    yf = jnp.ravel(y)
    pad = padded_n - n
    if pad:
        # Zero-pad both inputs: diff = 0 on the tail -> contributes exactly 0.
        xf = jnp.pad(xf, (0, pad))
        yf = jnp.pad(yf, (0, pad))
    return (xf.reshape(padded_rows, _LANES),
            yf.reshape(padded_rows, _LANES),
            tile_r, padded_rows, n)


def smooth_l1_loss(x, y, *, size_average=True, reduce=True, tile_rows=2048):
    """Pallas TPU SmoothL1Loss forward, matching torch.nn.SmoothL1Loss."""
    assert x.shape == y.shape, "input and target must have the same shape"

    x2, y2, tile_r, padded_rows, n = _prepare_lane_dense(x, y, tile_rows)
    num_tiles = padded_rows // tile_r
    in_spec = pl.BlockSpec((tile_r, _LANES), lambda i: (i, 0))

    if not reduce:
        out = pl.pallas_call(
            _smooth_l1_elementwise_kernel,
            out_shape=jax.ShapeDtypeStruct((padded_rows, _LANES), x.dtype),
            grid_spec=pltpu.PrefetchScalarGridSpec(
                num_scalar_prefetch=0,
                grid=(num_tiles,),
                in_specs=[in_spec, in_spec],
                out_specs=pl.BlockSpec((tile_r, _LANES), lambda i: (i, 0)),
            ),
            compiler_params=pltpu.CompilerParams(
                dimension_semantics=("parallel",)),
        )(x2, y2)
        return out.reshape(-1)[:n].reshape(x.shape)

    bytes_per_elem = x.dtype.itemsize + y.dtype.itemsize
    cost = pl.CostEstimate(
        flops=4 * n,
        transcendentals=0,
        bytes_accessed=n * bytes_per_elem + num_tiles * 4,
    )

    partials = pl.pallas_call(
        _smooth_l1_partial_sum_kernel,
        out_shape=jax.ShapeDtypeStruct((num_tiles, 1), jnp.float32),
        grid_spec=pltpu.PrefetchScalarGridSpec(
            num_scalar_prefetch=0,
            grid=(num_tiles,),
            in_specs=[in_spec, in_spec],
            # Each grid step owns its own (1,1) SMEM partial -> "parallel" is safe.
            out_specs=pl.BlockSpec((1, 1), lambda i: (i, 0),
                                   memory_space=pltpu.SMEM),
        ),
        compiler_params=pltpu.CompilerParams(
            dimension_semantics=("parallel",)),
        cost_estimate=cost,
    )(x2, y2)

    total = jnp.sum(partials)
    if size_average:
        total = total / n
    return total.astype(x.dtype)


def _reference(x, y, size_average=True, reduce=True):
    d = x - y
    ad = jnp.abs(d)
    loss = jnp.where(ad < 1.0, 0.5 * d * d, ad - 0.5)
    if not reduce:
        return loss
    return jnp.mean(loss) if size_average else jnp.sum(loss)


if __name__ == "__main__":
    key = jax.random.PRNGKey(0)
    k1, k2 = jax.random.split(key)

    shape = (2, 4, 16, 16)  # small (N, *) inputs, n = 2048 elements
    x = jax.random.normal(k1, shape, dtype=jnp.float32)
    y = jax.random.normal(k2, shape, dtype=jnp.float32)

    # Default module behaviour: mean over all elements (scalar).
    loss = jax.block_until_ready(smooth_l1_loss(x, y))
    ref = _reference(x, y)
    assert jnp.allclose(loss, ref, rtol=1e-6, atol=1e-6), (loss, ref)

    # size_average=False: sum.
    loss_sum = jax.block_until_ready(smooth_l1_loss(x, y, size_average=False))
    ref_sum = _reference(x, y, size_average=False)
    assert jnp.allclose(loss_sum, ref_sum, rtol=1e-5, atol=1e-5), (loss_sum, ref_sum)

    # reduce=False: per-element loss, same shape as the input.
    loss_elem = jax.block_until_ready(smooth_l1_loss(x, y, reduce=False))
    ref_elem = _reference(x, y, reduce=False)
    assert loss_elem.shape == x.shape
    assert jnp.allclose(loss_elem, ref_elem, rtol=1e-6, atol=1e-6)

    print("KERNEL_OK")
</pallas_src>

<mosaic_0001>
module attributes {stable_mosaic.version = 11 : i64} {
  func.func @_smooth_l1_partial_sum_kernel(%arg0: i32, %arg1: memref<16x128xf32, #tpu.memory_space<vmem>>, %arg2: memref<16x128xf32, #tpu.memory_space<vmem>>, %arg3: memref<1x1xf32, #tpu.memory_space<smem>>) attributes {dimension_semantics = [#tpu.dimension_semantics<parallel>], iteration_bounds = array<i64: 1>, scalar_prefetch = 0 : i64, scratch_operands = 0 : i64, tpu.core_type = #tpu.core_type<tc>, window_params = [{transform_indices = @transform_0, window_bounds = array<i64: 16, 128>}, {transform_indices = @transform_1, window_bounds = array<i64: 16, 128>}, {transform_indices = @transform_2, window_bounds = array<i64: 1, 1>}]} {
    %c0 = arith.constant 0 : index
    %c0_0 = arith.constant 0 : index
    %0 = vector.load %arg1[%c0, %c0_0] : memref<16x128xf32, #tpu.memory_space<vmem>>, vector<16x128xf32>
    %c0_1 = arith.constant 0 : index
    %c0_2 = arith.constant 0 : index
    %1 = vector.load %arg2[%c0_1, %c0_2] : memref<16x128xf32, #tpu.memory_space<vmem>>, vector<16x128xf32>
    %2 = arith.subf %0, %1 : vector<16x128xf32>
    %3 = math.absf %2 : vector<16x128xf32>
    %cst = arith.constant 1.000000e+00 : f32
    %4 = vector.broadcast %cst : f32 to vector<16x128xf32>
    %5 = arith.cmpf olt, %3, %4 : vector<16x128xf32>
    %cst_3 = arith.constant 5.000000e-01 : f32
    %6 = vector.broadcast %cst_3 : f32 to vector<16x128xf32>
    %7 = arith.mulf %6, %2 : vector<16x128xf32>
    %8 = arith.mulf %7, %2 : vector<16x128xf32>
    %cst_4 = arith.constant 5.000000e-01 : f32
    %9 = vector.broadcast %cst_4 : f32 to vector<16x128xf32>
    %10 = arith.subf %3, %9 : vector<16x128xf32>
    %11 = arith.select %5, %8, %10 : vector<16x128xi1>, vector<16x128xf32>
    %12 = vector.shape_cast %11 : vector<16x128xf32> to vector<1x16x128xf32>
    %cst_5 = arith.constant dense<0.000000e+00> : vector<1xf32>
    %13 = vector.multi_reduction <add>, %12, %cst_5 [1, 2] : vector<1x16x128xf32> to vector<1xf32>
    %14 = vector.shape_cast %13 : vector<1xf32> to vector<1x1x1xf32>
    %15 = vector.extract %14[0, 0, 0] : f32 from vector<1x1x1xf32>
    %c0_6 = arith.constant 0 : index
    %c0_7 = arith.constant 0 : index
    %16 = memref.load %arg3[%c0_6, %c0_7] : memref<1x1xf32, #tpu.memory_space<smem>>
    memref.store %15, %arg3[%c0_6, %c0_7] : memref<1x1xf32, #tpu.memory_space<smem>>
    return
  }
  func.func @transform_0(%arg0: i32) -> (i32, i32) {
    %c0_i32 = arith.constant 0 : i32
    %c0_i32_0 = arith.constant 0 : i32
    return %arg0, %c0_i32 : i32, i32
  }
  func.func @transform_1(%arg0: i32) -> (i32, i32) {
    %c0_i32 = arith.constant 0 : i32
    %c0_i32_0 = arith.constant 0 : i32
    return %arg0, %c0_i32 : i32, i32
  }
  func.func @transform_2(%arg0: i32) -> (i32, i32) {
    %c0_i32 = arith.constant 0 : i32
    %c0_i32_0 = arith.constant 0 : i32
    return %arg0, %c0_i32 : i32, i32
  }
}

</mosaic_0001>

<llo_original>
// kernel: tpu_custom_call.1
$region0: #{tpu_custom_call.1}
  #allocation0 [shape = 'u32[]', space=smem, size = 0x4, offset = 0x4, fixed_abs, tag = 'smem constant byte address 0x4 - core index']
  #allocation1 [shape = 'u32[72,128]{1,0:T(1,128)}', space=vmem, size = 0x9000, scoped, tag = 'internal scratch']
  %s0 = inlined_call_operand.hbm [shape: f32[16,128], index: 0, kind: input, shape index: {}]
  %s1 = inlined_call_operand.hbm [shape: f32[16,128], index: 1, kind: input, shape index: {}]
  %s2 = inlined_call_operand.hbm [shape: f32[1,1], index: 2, kind: output, shape index: {}]
  %s3 = sld [smem:[#allocation0]]
  $region26: #{tpu_custom_call.1} parent=0
    _
  %s5 = ssub.s32 1, %s3
  %s6 = scalar_select 0, %s5, %s3
  $region1: #{tpu_custom_call.1} parent=0
    #allocation2 [shape = 'u8[8192]{0}', space=vmem, size = 0x2000, scoped, tag = 'input window, operand 0, single buffered']
    #allocation3 [shape = 's32[1]{0}', space=sflag, size = 0x4, scoped, tag = 'scoped memory for tpu_custom_call.1']
    #allocation4 [shape = 's32[1]{0}', space=sflag, size = 0x4, scoped, tag = 'scoped memory for tpu_custom_call.1']
    #allocation5 [shape = 'u8[8192]{0}', space=vmem, size = 0x2000, scoped, tag = 'input window, operand 1, single buffered']
    #allocation6 [shape = 's32[1]{0}', space=sflag, size = 0x4, scoped, tag = 'scoped memory for tpu_custom_call.1']
    #allocation7 [shape = 'u8[512]{0}', space=smem, size = 0x200, scoped, tag = 'output window, operand 0, single buffered']
    %7 = vsyncpa [#allocation3], 0
    %8 = vsyncpa [#allocation6], 0
    %9 = vsyncpa [#allocation4], 0
    // Predicated region
    $region2: #{tpu_custom_call.1} parent=1 // pred_check
      _
    $region3: #{tpu_custom_call.1} parent=1 // pred_check_branch
      %11 = sbr.rel (0) target = $region5
    $region4: #{tpu_custom_call.1} parent=1 // pred_region
      %13 = vsyncadd [#allocation3], 0
      %s14 = sshll.u32 %s0, 4
      %s15 = int_to_ptr.hbm [resolvable:$true] %s14
      %s16 = sshll.u32 [#allocation2], 4
      %s17 = int_to_ptr.vmem [resolvable:$true] %s16
      %22 = dma.hbm_to_vmem [thread:$0]  %s15, 256, %s17, [#allocation3], 128, 128, 8
    $region5: #{tpu_custom_call.1} parent=1 // pred_fallthru
      _
    // Predicated region
    $region6: #{tpu_custom_call.1} parent=1 // pred_check
      _
    $region7: #{tpu_custom_call.1} parent=1 // pred_check_branch
      %24 = sbr.rel (0) target = $region9
    $region8: #{tpu_custom_call.1} parent=1 // pred_region
      %26 = vsyncadd [#allocation6], 0
      %s27 = sshll.u32 %s1, 4
      %s28 = int_to_ptr.hbm [resolvable:$true] %s27
      %s29 = sshll.u32 [#allocation5], 4
      %s30 = int_to_ptr.vmem [resolvable:$true] %s29
      %35 = dma.hbm_to_vmem [thread:$0]  %s28, 256, %s30, [#allocation6], 128, 128, 8
    $region9: #{tpu_custom_call.1} parent=1 // pred_fallthru
      _
    // Predicated region
    $region10: #{tpu_custom_call.1} parent=1 // pred_check
      _
    $region11: #{tpu_custom_call.1} parent=1 // pred_check_branch
      %37 = sbr.rel (0) target = $region13
    $region12: #{tpu_custom_call.1} parent=1 // pred_region
      %39 = dma.done [#allocation3], 256
    $region13: #{tpu_custom_call.1} parent=1 // pred_fallthru
      _
    // Predicated region
    $region14: #{tpu_custom_call.1} parent=1 // pred_check
      _
    $region15: #{tpu_custom_call.1} parent=1 // pred_check_branch
      %41 = sbr.rel (0) target = $region17
    $region16: #{tpu_custom_call.1} parent=1 // pred_region
      %43 = dma.done [#allocation6], 256
    $region17: #{tpu_custom_call.1} parent=1 // pred_fallthru
      _
    %v44 = vld [vmem:[#allocation2] sm:$0xff]
    %v45 = vld [vmem:[#allocation2 + $0x8] sm:$0xff]
    %v46 = vld [vmem:[#allocation5] sm:$0xff]
    %v47 = vld [vmem:[#allocation5 + $0x8] sm:$0xff]
    %v48 = vsub.f32 %v44, %v46
    %v49 = vsub.f32 %v45, %v47
    %v50 = vand.u32 2147483647, %v48
    %v51 = vand.u32 2147483647, %v49
    %vm52 = vcmp.lt.f32.partialorder %v50, 1.0
    %vm53 = vcmp.lt.f32.partialorder %v51, 1.0
    %v54 = vmul.f32 %v48, 0.5
    %v55 = vmul.f32 %v49, 0.5
    %v56 = vmul.f32 %v54, %v48
    %v57 = vmul.f32 %v55, %v49
    %v58 = vsub.f32 %v50, 0.5
    %v59 = vsub.f32 %v51, 0.5
    %v60 = vsel %vm52, %v56, %v58
    %v61 = vsel %vm53, %v57, %v59
    %v62 = vadd.f32 %v60, %v61
    %63 = vadd.xlane.f32.xlu0 %v62
    %v64 = vpop.xlane.xlu0 %63
    %v65 = vrot.slane %v64, 4
    %v66 = vadd.f32 %v64, %v65
    %v67 = vrot.slane %v66, 2
    %v68 = vadd.f32 %v66, %v67
    %v69 = vrot.slane %v68, 1
    %v70 = vadd.f32 %v68, %v69
    %s71 = vtos %v70
    %s72 = scalar_lea.smem [#allocation7], 0
    %73 = sst [smem:[%s72]] %s71
    // Predicated region
    $region18: #{tpu_custom_call.1} parent=1 // pred_check
      _
    $region19: #{tpu_custom_call.1} parent=1 // pred_check_branch
      %75 = sbr.rel (0) target = $region21
    $region20: #{tpu_custom_call.1} parent=1 // pred_region
      %77 = vsyncadd [#allocation4], 0
      %s79 = sshll.u32 %s2, 4
      %s80 = int_to_ptr.hbm [resolvable:$true] %s79
      %82 = dma.smem_to_hbm [#allocation7], 16, %s80, [#allocation4]
    $region21: #{tpu_custom_call.1} parent=1 // pred_fallthru
      _
    // Predicated region
    $region22: #{tpu_custom_call.1} parent=1 // pred_check
      _
    $region23: #{tpu_custom_call.1} parent=1 // pred_check_branch
      %84 = sbr.rel (0) target = $region25
    $region24: #{tpu_custom_call.1} parent=1 // pred_region
      %86 = dma.done [#allocation4], 16
    $region25: #{tpu_custom_call.1} parent=1 // pred_fallthru
      _
    %87 = sfence
    %88 = vsyncpa [#allocation3], 1
    %89 = vsyncpa [#allocation6], 1
    %90 = vsyncpa [#allocation4], 1

</llo_original>
